<compile_context>
chip_gen: v6e
topology: v6e:2x2x1
jax: 0.10.0
libtpu: 0.0.40
codegen_flags: <defaults>
</compile_context>

<pallas_src>
import jax
import jax.numpy as jnp
from jax.experimental import pallas as pl
from jax.experimental.pallas import tpu as pltpu


def td3_critic_kernel(sa_ref, w1_ref, b1_ref, w2_ref, b2_ref,
                      wout_ref, bout_ref, q_ref):
    """Fused two-head critic MLP; heads live in disjoint lane halves.

    Lanes [0:H] carry q1, lanes [H:2H] carry q2.  W2 is block-diagonal so the
    heads never mix; Wout_packed (2H, 2) lands q1 in column 0 and q2 in
    column 1 -> one lane-packed (B, 2) store.
    """
    h = jnp.dot(sa_ref[...], w1_ref[...],
                preferred_element_type=jnp.float32) + b1_ref[...]
    h = jnp.maximum(h, 0.0)

    # static unroll over the (n_layers - 1) extra hidden layers
    for l in range(w2_ref.shape[0]):
        h = jnp.dot(h, w2_ref[l], preferred_element_type=jnp.float32) + b2_ref[l]
        h = jnp.maximum(h, 0.0)

    q = jnp.dot(h, wout_ref[...],
                preferred_element_type=jnp.float32) + bout_ref[...]
    q_ref[...] = q.astype(q_ref.dtype)


_BATCH_TILE = 256  # batch tile for the parallel-grid path (large-B / v7x 2nd TC)


@jax.jit
def td3_critic_forward(state, action, packed):
    """Returns (q1, q2), each (B, 1), matching the PyTorch forward."""
    B = state.shape[0]
    d_in = state.shape[1] + action.shape[1]
    sa = jnp.concatenate([state, action], axis=1)      # tiny, fused under jit

    w1, b1 = packed["w1"], packed["b1"]
    w2, b2 = packed["w2"], packed["b2"]
    wout, bout = packed["wout"], packed["bout"]
    h2 = w1.shape[1]                                   # 2 * hidden_dim
    nl = w2.shape[0]                                   # n_layers - 1

    if B > _BATCH_TILE and B % _BATCH_TILE == 0:
        # Large batch: tile the batch axis with a parallel grid (uses both
        # TensorCores on v7x, restores double-buffered activation DMA).
        # Weight tiles are small (~130 KiB total), well under v7x's 64 MiB VMEM.
        q = pl.pallas_call(
            td3_critic_kernel,
            out_shape=jax.ShapeDtypeStruct((B, 2), jnp.float32),
            grid=(B // _BATCH_TILE,),
            in_specs=[
                pl.BlockSpec((_BATCH_TILE, d_in), lambda i: (i, 0)),
                pl.BlockSpec((d_in, h2), lambda i: (0, 0)),
                pl.BlockSpec((1, h2), lambda i: (0, 0)),
                pl.BlockSpec((nl, h2, h2), lambda i: (0, 0, 0)),
                pl.BlockSpec((nl, 1, h2), lambda i: (0, 0, 0)),
                pl.BlockSpec((h2, 2), lambda i: (0, 0)),
                pl.BlockSpec((1, 2), lambda i: (0, 0)),
            ],
            out_specs=pl.BlockSpec((_BATCH_TILE, 2), lambda i: (i, 0)),
            compiler_params=pltpu.CompilerParams(
                dimension_semantics=("parallel",)),
        )(sa, w1, b1, w2, b2, wout, bout)
    else:
        # Small batch: single invocation, whole-array VMEM blocks (no grid,
        # no per-step pipeline overhead).  Footprint ~170 KiB << any VMEM.
        vmem = pl.BlockSpec(memory_space=pltpu.MemorySpace.VMEM)
        q = pl.pallas_call(
            td3_critic_kernel,
            out_shape=jax.ShapeDtypeStruct((B, 2), jnp.float32),
            in_specs=[vmem] * 7,
            out_specs=vmem,
        )(sa, w1, b1, w2, b2, wout, bout)

    return q[:, 0:1], q[:, 1:2]                        # q1, q2 (cheap under jit)


def init_params(key, state_dim, action_dim, hidden_dim, n_layers=2):
    """PyTorch-Linear-style init: U(-1/sqrt(fan_in), 1/sqrt(fan_in)).
    Raw (unpacked) per-head layout, head 0 = q1, head 1 = q2."""
    d_in = state_dim + action_dim
    ks = jax.random.split(key, 6)

    def lin(k, fan_in, shape):
        bound = 1.0 / jnp.sqrt(jnp.float32(fan_in))
        return jax.random.uniform(k, shape, jnp.float32, -bound, bound)

    return {
        "w1":   lin(ks[0], d_in,       (2, d_in, hidden_dim)),
        "b1":   lin(ks[1], d_in,       (2, 1, hidden_dim)),
        "w2":   lin(ks[2], hidden_dim, (2, n_layers - 1, hidden_dim, hidden_dim)),
        "b2":   lin(ks[3], hidden_dim, (2, n_layers - 1, 1, hidden_dim)),
        "wout": lin(ks[4], hidden_dim, (2, hidden_dim, 1)),
        "bout": lin(ks[5], hidden_dim, (1, 2)),
    }


def pack_params(raw):
    """One-time head packing along the lane axis (do NOT call per forward).

    q1 occupies lanes [0:H], q2 lanes [H:2H]; W2 is block-diagonal so the
    heads stay independent; Wout is (2H, 2) with q1 in column 0, q2 in col 1.
    Adding the structural zeros is exact in fp32, so numerics match the
    unpacked per-head model bit-for-bit in terms of partial sums.
    """
    w1, b1 = raw["w1"], raw["b1"]
    w2, b2 = raw["w2"], raw["b2"]
    wout = raw["wout"]
    H = w1.shape[-1]
    nl = w2.shape[1]

    w1_p = jnp.concatenate([w1[0], w1[1]], axis=1)                 # (D_in, 2H)
    b1_p = jnp.concatenate([b1[0], b1[1]], axis=1)                 # (1, 2H)

    zhh = jnp.zeros((H, H), jnp.float32)
    w2_p = jnp.stack([jnp.block([[w2[0, l], zhh], [zhh, w2[1, l]]])
                      for l in range(nl)], axis=0)                 # (nl, 2H, 2H)
    b2_p = jnp.stack([jnp.concatenate([b2[0, l], b2[1, l]], axis=1)
                      for l in range(nl)], axis=0)                 # (nl, 1, 2H)

    zcol = jnp.zeros((H, 1), jnp.float32)
    wout_p = jnp.concatenate(
        [jnp.concatenate([wout[0], zcol], axis=0),                 # col 0 -> q1
         jnp.concatenate([zcol, wout[1]], axis=0)], axis=1)        # col 1 -> q2

    return {"w1": w1_p, "b1": b1_p, "w2": w2_p, "b2": b2_p,
            "wout": wout_p, "bout": raw["bout"]}


def reference_forward(state, action, raw):
    """Pure-JAX reference of the PyTorch forward pass (unpacked params)."""
    sa = jnp.concatenate([state, action], axis=1)
    outs = []
    for hd in range(2):
        x = jnp.maximum(sa @ raw["w1"][hd] + raw["b1"][hd], 0.0)
        for l in range(raw["w2"].shape[1]):
            x = jnp.maximum(x @ raw["w2"][hd, l] + raw["b2"][hd, l], 0.0)
        outs.append(x @ raw["wout"][hd] + raw["bout"][0, hd])      # (B, 1)
    return outs[0], outs[1]


if __name__ == "__main__":
    # Module defaults: state_dim=12, action_dim=4, hidden_dim=64, n_layers=2,
    # use_layernorm=False; batch=8.
    B, STATE_DIM, ACTION_DIM, HIDDEN = 8, 12, 4, 64

    key = jax.random.PRNGKey(0)
    k_state, k_action, k_params = jax.random.split(key, 3)

    state = jax.random.normal(k_state, (B, STATE_DIM), jnp.float32)
    action = jax.random.normal(k_action, (B, ACTION_DIM), jnp.float32)

    raw_params = init_params(k_params, STATE_DIM, ACTION_DIM, HIDDEN)
    packed_params = pack_params(raw_params)        # one-time param prep

    q1, q2 = td3_critic_forward(state, action, packed_params)
    jax.block_until_ready((q1, q2))

    r1, r2 = reference_forward(state, action, raw_params)
    assert q1.shape == (B, 1) and q2.shape == (B, 1)
    assert jnp.allclose(q1, r1, atol=1e-5, rtol=1e-5)
    assert jnp.allclose(q2, r2, atol=1e-5, rtol=1e-5)

    print("KERNEL_OK")
</pallas_src>

<mosaic_0001>
module attributes {stable_mosaic.version = 11 : i64} {
  func.func @td3_critic_kernel(%arg0: memref<8x16xf32, #tpu.memory_space<vmem>>, %arg1: memref<16x128xf32, #tpu.memory_space<vmem>>, %arg2: memref<1x128xf32, #tpu.memory_space<vmem>>, %arg3: memref<1x128x128xf32, #tpu.memory_space<vmem>>, %arg4: memref<1x1x128xf32, #tpu.memory_space<vmem>>, %arg5: memref<128x2xf32, #tpu.memory_space<vmem>>, %arg6: memref<1x2xf32, #tpu.memory_space<vmem>>, %arg7: memref<8x2xf32, #tpu.memory_space<vmem>>) attributes {dimension_semantics = [], scalar_prefetch = 0 : i64, scratch_operands = 0 : i64, tpu.core_type = #tpu.core_type<tc>} {
    %c0 = arith.constant 0 : index
    %c0_0 = arith.constant 0 : index
    %0 = vector.load %arg0[%c0, %c0_0] : memref<8x16xf32, #tpu.memory_space<vmem>>, vector<8x16xf32>
    %c0_1 = arith.constant 0 : index
    %c0_2 = arith.constant 0 : index
    %1 = vector.load %arg1[%c0_1, %c0_2] : memref<16x128xf32, #tpu.memory_space<vmem>>, vector<16x128xf32>
    %cst = arith.constant dense<0.000000e+00> : vector<8x128xf32>
    %2 = tpu.matmul %0, %1, %cst {dimension_numbers = #tpu.dot_dimension_numbers<[1], [0], [0], [1], [0, 0, 1, 1], [], []>} : vector<8x16xf32>, vector<16x128xf32>, vector<8x128xf32> -> vector<8x128xf32>
    %c0_3 = arith.constant 0 : index
    %c0_4 = arith.constant 0 : index
    %3 = vector.load %arg2[%c0_3, %c0_4] : memref<1x128xf32, #tpu.memory_space<vmem>>, vector<1x128xf32>
    %4 = vector.broadcast %3 : vector<1x128xf32> to vector<8x128xf32>
    %5 = arith.addf %2, %4 : vector<8x128xf32>
    %cst_5 = arith.constant 0.000000e+00 : f32
    %6 = vector.broadcast %cst_5 : f32 to vector<8x128xf32>
    %7 = arith.maximumf %5, %6 : vector<8x128xf32>
    %c0_6 = arith.constant 0 : index
    %c0_7 = arith.constant 0 : index
    %c0_8 = arith.constant 0 : index
    %8 = vector.load %arg3[%c0_6, %c0_7, %c0_8] : memref<1x128x128xf32, #tpu.memory_space<vmem>>, vector<1x128x128xf32>
    %9 = vector.shape_cast %8 : vector<1x128x128xf32> to vector<128x128xf32>
    %cst_9 = arith.constant dense<0.000000e+00> : vector<8x128xf32>
    %10 = tpu.matmul %7, %9, %cst_9 {dimension_numbers = #tpu.dot_dimension_numbers<[1], [0], [0], [1], [0, 0, 1, 1], [], []>} : vector<8x128xf32>, vector<128x128xf32>, vector<8x128xf32> -> vector<8x128xf32>
    %c0_10 = arith.constant 0 : index
    %c0_11 = arith.constant 0 : index
    %c0_12 = arith.constant 0 : index
    %11 = vector.load %arg4[%c0_10, %c0_11, %c0_12] : memref<1x1x128xf32, #tpu.memory_space<vmem>>, vector<1x1x128xf32>
    %12 = vector.shape_cast %11 : vector<1x1x128xf32> to vector<1x128xf32>
    %13 = vector.broadcast %12 : vector<1x128xf32> to vector<8x128xf32>
    %14 = arith.addf %10, %13 : vector<8x128xf32>
    %cst_13 = arith.constant 0.000000e+00 : f32
    %15 = vector.broadcast %cst_13 : f32 to vector<8x128xf32>
    %16 = arith.maximumf %14, %15 : vector<8x128xf32>
    %c0_14 = arith.constant 0 : index
    %c0_15 = arith.constant 0 : index
    %17 = vector.load %arg5[%c0_14, %c0_15] : memref<128x2xf32, #tpu.memory_space<vmem>>, vector<128x2xf32>
    %cst_16 = arith.constant dense<0.000000e+00> : vector<8x2xf32>
    %18 = tpu.matmul %16, %17, %cst_16 {dimension_numbers = #tpu.dot_dimension_numbers<[1], [0], [0], [1], [0, 0, 1, 1], [], []>} : vector<8x128xf32>, vector<128x2xf32>, vector<8x2xf32> -> vector<8x2xf32>
    %c0_17 = arith.constant 0 : index
    %c0_18 = arith.constant 0 : index
    %19 = vector.load %arg6[%c0_17, %c0_18] : memref<1x2xf32, #tpu.memory_space<vmem>>, vector<1x2xf32>
    %20 = vector.broadcast %19 : vector<1x2xf32> to vector<8x2xf32>
    %21 = arith.addf %18, %20 : vector<8x2xf32>
    %c0_19 = arith.constant 0 : index
    %c0_20 = arith.constant 0 : index
    %22 = vector.load %arg7[%c0_19, %c0_20] : memref<8x2xf32, #tpu.memory_space<vmem>>, vector<8x2xf32>
    tpu.vector_store %arg7[%c0_19, %c0_20], %21 {strides = array<i32>} : memref<8x2xf32, #tpu.memory_space<vmem>>, vector<8x2xf32>,
    return
  }
}

</mosaic_0001>

<llo_original>
// kernel: td3_critic_forward.1
$region0: #{td3_critic_forward.1}
  #allocation0 [shape = 'u32[]', space=smem, size = 0x4, offset = 0x4, fixed_abs, tag = 'smem constant byte address 0x4 - core index']
  #allocation1 [shape = 'u32[144,128]{1,0:T(1,128)}', space=vmem, size = 0x12000, scoped, tag = 'internal scratch']
  %s0 = inlined_call_operand.vmem [shape: f32[8,16], index: 0, kind: input, shape index: {}]
  %s1 = inlined_call_operand.vmem [shape: f32[16,128], index: 1, kind: input, shape index: {}]
  %s2 = inlined_call_operand.vmem [shape: f32[1,128], index: 2, kind: input, shape index: {}]
  %s3 = inlined_call_operand.vmem [shape: f32[1,128,128], index: 3, kind: input, shape index: {}]
  %s4 = inlined_call_operand.vmem [shape: f32[1,1,128], index: 4, kind: input, shape index: {}]
  %s5 = inlined_call_operand.vmem [shape: f32[128,2], index: 5, kind: input, shape index: {}]
  %s6 = inlined_call_operand.vmem [shape: f32[1,2], index: 6, kind: input, shape index: {}]
  %s7 = inlined_call_operand.vmem [shape: f32[8,2], index: 7, kind: output, shape index: {}]
  %s8 = sld [smem:[#allocation0]]
  $region38: #{td3_critic_forward.1} parent=0
    _
  %s10 = ssub.s32 1, %s8
  %s11 = scalar_select 0, %s10, %s8
  // Predicated region
  $region2: #{td3_critic_forward.1} parent=0 // pred_check
    _
  $region3: #{td3_critic_forward.1} parent=0 // pred_check_branch
    %13 = sbr.rel (0) target = $region5
  $region4: #{td3_critic_forward.1} parent=0 // pred_region
    _
  $region5: #{td3_critic_forward.1} parent=0 // pred_fallthru
    _
  // Predicated region
  $region6: #{td3_critic_forward.1} parent=0 // pred_check
    _
  $region7: #{td3_critic_forward.1} parent=0 // pred_check_branch
    %15 = sbr.rel (0) target = $region9
  $region8: #{td3_critic_forward.1} parent=0 // pred_region
    _
  $region9: #{td3_critic_forward.1} parent=0 // pred_fallthru
    _
  // Predicated region
  $region10: #{td3_critic_forward.1} parent=0 // pred_check
    _
  $region11: #{td3_critic_forward.1} parent=0 // pred_check_branch
    %17 = sbr.rel (0) target = $region13
  $region12: #{td3_critic_forward.1} parent=0 // pred_region
    _
  $region13: #{td3_critic_forward.1} parent=0 // pred_fallthru
    _
  // Predicated region
  $region14: #{td3_critic_forward.1} parent=0 // pred_check
    _
  $region15: #{td3_critic_forward.1} parent=0 // pred_check_branch
    %19 = sbr.rel (0) target = $region17
  $region16: #{td3_critic_forward.1} parent=0 // pred_region
    _
  $region17: #{td3_critic_forward.1} parent=0 // pred_fallthru
    _
  // Predicated region
  $region18: #{td3_critic_forward.1} parent=0 // pred_check
    _
  $region19: #{td3_critic_forward.1} parent=0 // pred_check_branch
    %21 = sbr.rel (0) target = $region21
  $region20: #{td3_critic_forward.1} parent=0 // pred_region
    _
  $region21: #{td3_critic_forward.1} parent=0 // pred_fallthru
    _
  // Predicated region
  $region22: #{td3_critic_forward.1} parent=0 // pred_check
    _
  $region23: #{td3_critic_forward.1} parent=0 // pred_check_branch
    %23 = sbr.rel (0) target = $region25
  $region24: #{td3_critic_forward.1} parent=0 // pred_region
    _
  $region25: #{td3_critic_forward.1} parent=0 // pred_fallthru
    _
  // Predicated region
  $region26: #{td3_critic_forward.1} parent=0 // pred_check
    _
  $region27: #{td3_critic_forward.1} parent=0 // pred_check_branch
    %25 = sbr.rel (0) target = $region29
  $region28: #{td3_critic_forward.1} parent=0 // pred_region
    _
  $region29: #{td3_critic_forward.1} parent=0 // pred_fallthru
    _
  %v26 = vld [vmem:[%s0] sm:$0xff]
  %v27 = vld [vmem:[%s1] sm:$0xff]
  %v28 = vld [vmem:[%s1 + $0x8] sm:$0xff]
  %v29 = vld [vmem:[%s2] sm:$0x1]
  %v31 = vlaneseq
  %v32 = vshrl.u32 %v31, 7
  %v33 = vsub.s32 0, %v32
  %v34 = vrot.slane %v29, %v33
  %vm36 = vcmask 130048
  %v38 = vsel %vm36, %v26, 0
  %40 = vmatprep.subr.mxu0 0.0
  %41 = vmatpush1.msra.mxu0 0.0
  %42 = vmatprep.subr.mxu0 0.0
  %43 = vmatpush1.msra.mxu0 0.0
  %44 = vmatprep.subr.mxu0 0.0
  %45 = vmatpush1.msra.mxu0 0.0
  %46 = vmatprep.subr.mxu0 0.0
  %47 = vmatpush1.msra.mxu0 0.0
  %48 = vmatprep.subr.mxu0 0.0
  %49 = vmatpush1.msra.mxu0 0.0
  %50 = vmatprep.subr.mxu0 0.0
  %51 = vmatpush1.msra.mxu0 0.0
  %52 = vmatprep.subr.mxu0 0.0
  %53 = vmatpush1.msra.mxu0 0.0
  %54 = vmatprep.subr.mxu0 0.0
  %55 = vmatpush1.msra.mxu0 0.0
  %56 = vmatprep.subr.mxu0 0.0
  %57 = vmatpush1.msra.mxu0 0.0
  %58 = vmatprep.subr.mxu0 0.0
  %59 = vmatpush1.msra.mxu0 0.0
  %60 = vmatprep.subr.mxu0 0.0
  %61 = vmatpush1.msra.mxu0 0.0
  %62 = vmatprep.subr.mxu0 0.0
  %63 = vmatpush1.msra.mxu0 0.0
  %64 = vmatprep.subr.mxu0 0.0
  %65 = vmatpush1.msra.mxu0 0.0
  %66 = vmatprep.subr.mxu0 0.0
  %67 = vmatpush1.msra.mxu0 0.0
  %68 = vmatprep.subr.mxu0 0.0
  %69 = vmatpush1.msra.mxu0 %v28
  %70 = vmatprep.subr.mxu0 0.0
  %71 = vmatpush1.msra.mxu0 %v27
  %72 = vmatprep.subr.mxu0 0.0
  %73 = vmatpush2.msra.mxu0 0.0
  %74 = vmatprep.subr.mxu0 0.0
  %75 = vmatpush2.msra.mxu0 0.0
  %76 = vmatprep.subr.mxu0 0.0
  %77 = vmatpush2.msra.mxu0 0.0
  %78 = vmatprep.subr.mxu0 0.0
  %79 = vmatpush2.msra.mxu0 0.0
  %80 = vmatprep.subr.mxu0 0.0
  %81 = vmatpush2.msra.mxu0 0.0
  %82 = vmatprep.subr.mxu0 0.0
  %83 = vmatpush2.msra.mxu0 0.0
  %84 = vmatprep.subr.mxu0 0.0
  %85 = vmatpush2.msra.mxu0 0.0
  %86 = vmatprep.subr.mxu0 0.0
  %87 = vmatpush2.msra.mxu0 0.0
  %88 = vmatprep.subr.mxu0 0.0
  %89 = vmatpush2.msra.mxu0 0.0
  %90 = vmatprep.subr.mxu0 0.0
  %91 = vmatpush2.msra.mxu0 0.0
  %92 = vmatprep.subr.mxu0 0.0
  %93 = vmatpush2.msra.mxu0 0.0
  %94 = vmatprep.subr.mxu0 0.0
  %95 = vmatpush2.msra.mxu0 0.0
  %96 = vmatprep.subr.mxu0 0.0
  %97 = vmatpush2.msra.mxu0 0.0
  %98 = vmatprep.subr.mxu0 0.0
  %99 = vmatpush2.msra.mxu0 0.0
  %100 = vmatprep.subr.mxu0 0.0
  %101 = vmatpush2.msra.mxu0 0.0
  %102 = vmatprep.subr.mxu0 0.0
  %103 = vmatpush2.msra.mxu0 0.0
  %104 = vmatprep.mubr.f32.mxu0 0.0
  %105 = vmatmul.mubr.f32.gmra.mxu0 %v38
  %v106 = vpop.f32.mrf.mxu0
  %v107 = vadd.f32 %v34, %v106
  %v108 = vpop.f32.mrf.mxu0
  %109 = vdwg.mxu0
  %v110 = vmax.f32 %v107, 0.0
  %v111 = vld [vmem:[%s3] sm:$0xff]
  %v112 = vld [vmem:[%s3 + $0x8] sm:$0xff]
  %v113 = vld [vmem:[%s3 + $0x10] sm:$0xff]
  %v114 = vld [vmem:[%s3 + $0x18] sm:$0xff]
  %v115 = vld [vmem:[%s3 + $0x20] sm:$0xff]
  %v116 = vld [vmem:[%s3 + $0x28] sm:$0xff]
  %v117 = vld [vmem:[%s3 + $0x30] sm:$0xff]
  %v118 = vld [vmem:[%s3 + $0x38] sm:$0xff]
  %v119 = vld [vmem:[%s3 + $0x40] sm:$0xff]
  %v120 = vld [vmem:[%s3 + $0x48] sm:$0xff]
  %v121 = vld [vmem:[%s3 + $0x50] sm:$0xff]
  %v122 = vld [vmem:[%s3 + $0x58] sm:$0xff]
  %v123 = vld [vmem:[%s3 + $0x60] sm:$0xff]
  %v124 = vld [vmem:[%s3 + $0x68] sm:$0xff]
  %v125 = vld [vmem:[%s3 + $0x70] sm:$0xff]
  %v126 = vld [vmem:[%s3 + $0x78] sm:$0xff]
  %v127 = vld [vmem:[%s4] sm:$0x1]
  %v129 = vlaneseq
  %v130 = vshrl.u32 %v129, 7
  %v131 = vsub.s32 0, %v130
  %v132 = vrot.slane %v127, %v131
  %134 = vmatprep.subr.mxu0 0.0
  %135 = vmatpush1.msra.mxu0 %v126
  %136 = vmatprep.subr.mxu0 0.0
  %137 = vmatpush1.msra.mxu0 %v125
  %138 = vmatprep.subr.mxu0 0.0
  %139 = vmatpush1.msra.mxu0 %v124
  %140 = vmatprep.subr.mxu0 0.0
  %141 = vmatpush1.msra.mxu0 %v123
  %142 = vmatprep.subr.mxu0 0.0
  %143 = vmatpush1.msra.mxu0 %v122
  %144 = vmatprep.subr.mxu0 0.0
  %145 = vmatpush1.msra.mxu0 %v121
  %146 = vmatprep.subr.mxu0 0.0
  %147 = vmatpush1.msra.mxu0 %v120
  %148 = vmatprep.subr.mxu0 0.0
  %149 = vmatpush1.msra.mxu0 %v119
  %150 = vmatprep.subr.mxu0 0.0
  %151 = vmatpush1.msra.mxu0 %v118
  %152 = vmatprep.subr.mxu0 0.0
  %153 = vmatpush1.msra.mxu0 %v117
  %154 = vmatprep.subr.mxu0 0.0
  %155 = vmatpush1.msra.mxu0 %v116
  %156 = vmatprep.subr.mxu0 0.0
  %157 = vmatpush1.msra.mxu0 %v115
  %158 = vmatprep.subr.mxu0 0.0
  %159 = vmatpush1.msra.mxu0 %v114
  %160 = vmatprep.subr.mxu0 0.0
  %161 = vmatpush1.msra.mxu0 %v113
  %162 = vmatprep.subr.mxu0 0.0
  %163 = vmatpush1.msra.mxu0 %v112
  %164 = vmatprep.subr.mxu0 0.0
  %165 = vmatpush1.msra.mxu0 %v111
  %166 = vmatprep.subr.mxu0 0.0
  %167 = vmatpush2.msra.mxu0 0.0
  %168 = vmatprep.subr.mxu0 0.0
  %169 = vmatpush2.msra.mxu0 0.0
  %170 = vmatprep.subr.mxu0 0.0
  %171 = vmatpush2.msra.mxu0 0.0
  %172 = vmatprep.subr.mxu0 0.0
  %173 = vmatpush2.msra.mxu0 0.0
  %174 = vmatprep.subr.mxu0 0.0
  %175 = vmatpush2.msra.mxu0 0.0
  %176 = vmatprep.subr.mxu0 0.0
  %177 = vmatpush2.msra.mxu0 0.0
  %178 = vmatprep.subr.mxu0 0.0
  %179 = vmatpush2.msra.mxu0 0.0
  %180 = vmatprep.subr.mxu0 0.0
  %181 = vmatpush2.msra.mxu0 0.0
  %182 = vmatprep.subr.mxu0 0.0
  %183 = vmatpush2.msra.mxu0 0.0
  %184 = vmatprep.subr.mxu0 0.0
  %185 = vmatpush2.msra.mxu0 0.0
  %186 = vmatprep.subr.mxu0 0.0
  %187 = vmatpush2.msra.mxu0 0.0
  %188 = vmatprep.subr.mxu0 0.0
  %189 = vmatpush2.msra.mxu0 0.0
  %190 = vmatprep.subr.mxu0 0.0
  %191 = vmatpush2.msra.mxu0 0.0
  %192 = vmatprep.subr.mxu0 0.0
  %193 = vmatpush2.msra.mxu0 0.0
  %194 = vmatprep.subr.mxu0 0.0
  %195 = vmatpush2.msra.mxu0 0.0
  %196 = vmatprep.subr.mxu0 0.0
  %197 = vmatpush2.msra.mxu0 0.0
  %198 = vmatprep.mubr.f32.mxu0 0.0
  %199 = vmatmul.mubr.f32.gmra.mxu0 %v110
  %v200 = vpop.f32.mrf.mxu0
  %v201 = vadd.f32 %v132, %v200
  %v202 = vpop.f32.mrf.mxu0
  %203 = vdwg.mxu0
  %v204 = vmax.f32 %v201, 0.0
  %v205 = vld [vmem:[%s5] sm:$0xff]
  %v206 = vld [vmem:[%s5 + $0x8] sm:$0xff]
  %v207 = vld [vmem:[%s5 + $0x10] sm:$0xff]
  %v208 = vld [vmem:[%s5 + $0x18] sm:$0xff]
  %v209 = vld [vmem:[%s5 + $0x20] sm:$0xff]
  %v210 = vld [vmem:[%s5 + $0x28] sm:$0xff]
  %v211 = vld [vmem:[%s5 + $0x30] sm:$0xff]
  %v212 = vld [vmem:[%s5 + $0x38] sm:$0xff]
  %v213 = vld [vmem:[%s5 + $0x40] sm:$0xff]
  %v214 = vld [vmem:[%s5 + $0x48] sm:$0xff]
  %v215 = vld [vmem:[%s5 + $0x50] sm:$0xff]
  %v216 = vld [vmem:[%s5 + $0x58] sm:$0xff]
  %v217 = vld [vmem:[%s5 + $0x60] sm:$0xff]
  %v218 = vld [vmem:[%s5 + $0x68] sm:$0xff]
  %v219 = vld [vmem:[%s5 + $0x70] sm:$0xff]
  %v220 = vld [vmem:[%s5 + $0x78] sm:$0xff]
  %v221 = vld [vmem:[%s6] sm:$0x1]
  %v223 = vlaneseq
  %v224 = vshrl.u32 %v223, 7
  %v225 = vsub.s32 0, %v224
  %v226 = vrot.slane %v221, %v225
  %228 = vmatprep.subr.mxu0 0.0
  %229 = vmatpush1.msra.mxu0 %v220
  %230 = vmatprep.subr.mxu0 0.0
  %231 = vmatpush1.msra.mxu0 %v219
  %232 = vmatprep.subr.mxu0 0.0
  %233 = vmatpush1.msra.mxu0 %v218
  %234 = vmatprep.subr.mxu0 0.0
  %235 = vmatpush1.msra.mxu0 %v217
  %236 = vmatprep.subr.mxu0 0.0
  %237 = vmatpush1.msra.mxu0 %v216
  %238 = vmatprep.subr.mxu0 0.0
  %239 = vmatpush1.msra.mxu0 %v215
  %240 = vmatprep.subr.mxu0 0.0
  %241 = vmatpush1.msra.mxu0 %v214
  %242 = vmatprep.subr.mxu0 0.0
  %243 = vmatpush1.msra.mxu0 %v213
  %244 = vmatprep.subr.mxu0 0.0
  %245 = vmatpush1.msra.mxu0 %v212
  %246 = vmatprep.subr.mxu0 0.0
  %247 = vmatpush1.msra.mxu0 %v211
  %248 = vmatprep.subr.mxu0 0.0
  %249 = vmatpush1.msra.mxu0 %v210
  %250 = vmatprep.subr.mxu0 0.0
  %251 = vmatpush1.msra.mxu0 %v209
  %252 = vmatprep.subr.mxu0 0.0
  %253 = vmatpush1.msra.mxu0 %v208
  %254 = vmatprep.subr.mxu0 0.0
  %255 = vmatpush1.msra.mxu0 %v207
  %256 = vmatprep.subr.mxu0 0.0
  %257 = vmatpush1.msra.mxu0 %v206
  %258 = vmatprep.subr.mxu0 0.0
  %259 = vmatpush1.msra.mxu0 %v205
  %260 = vmatprep.subr.mxu0 0.0
  %261 = vmatpush2.msra.mxu0 0.0
  %262 = vmatprep.subr.mxu0 0.0
  %263 = vmatpush2.msra.mxu0 0.0
  %264 = vmatprep.subr.mxu0 0.0
  %265 = vmatpush2.msra.mxu0 0.0
  %266 = vmatprep.subr.mxu0 0.0
  %267 = vmatpush2.msra.mxu0 0.0
  %268 = vmatprep.subr.mxu0 0.0
  %269 = vmatpush2.msra.mxu0 0.0
  %270 = vmatprep.subr.mxu0 0.0
  %271 = vmatpush2.msra.mxu0 0.0
  %272 = vmatprep.subr.mxu0 0.0
  %273 = vmatpush2.msra.mxu0 0.0
  %274 = vmatprep.subr.mxu0 0.0
  %275 = vmatpush2.msra.mxu0 0.0
  %276 = vmatprep.subr.mxu0 0.0
  %277 = vmatpush2.msra.mxu0 0.0
  %278 = vmatprep.subr.mxu0 0.0
  %279 = vmatpush2.msra.mxu0 0.0
  %280 = vmatprep.subr.mxu0 0.0
  %281 = vmatpush2.msra.mxu0 0.0
  %282 = vmatprep.subr.mxu0 0.0
  %283 = vmatpush2.msra.mxu0 0.0
  %284 = vmatprep.subr.mxu0 0.0
  %285 = vmatpush2.msra.mxu0 0.0
  %286 = vmatprep.subr.mxu0 0.0
  %287 = vmatpush2.msra.mxu0 0.0
  %288 = vmatprep.subr.mxu0 0.0
  %289 = vmatpush2.msra.mxu0 0.0
  %290 = vmatprep.subr.mxu0 0.0
  %291 = vmatpush2.msra.mxu0 0.0
  %292 = vmatprep.mubr.f32.mxu0 0.0
  %293 = vmatmul.mubr.f32.gmra.mxu0 %v204
  %v294 = vpop.f32.mrf.mxu0
  %v295 = vadd.f32 %v226, %v294
  %v296 = vpop.f32.mrf.mxu0
  %297 = vdwg.mxu0
  %vm298 = vcmask 15360
  %299 = vst.msk [vmem:[%s7] sm:$0xff] %vm298, %v295
  // Predicated region
  $region30: #{td3_critic_forward.1} parent=0 // pred_check
    _
  $region31: #{td3_critic_forward.1} parent=0 // pred_check_branch
    %301 = sbr.rel (0) target = $region33
  $region32: #{td3_critic_forward.1} parent=0 // pred_region
    _
  $region33: #{td3_critic_forward.1} parent=0 // pred_fallthru
    _
  // Predicated region
  $region34: #{td3_critic_forward.1} parent=0 // pred_check
    _
  $region35: #{td3_critic_forward.1} parent=0 // pred_check_branch
    %303 = sbr.rel (0) target = $region37
  $region36: #{td3_critic_forward.1} parent=0 // pred_region
    _
  $region37: #{td3_critic_forward.1} parent=0 // pred_fallthru
    _

</llo_original>
